<compile_context>
chip_gen: v7x
topology: tpu7x:2x2x1
jax: 0.10.0
libtpu: 0.0.40
codegen_flags: <defaults>
</compile_context>

<pallas_src>
import functools

import jax
import jax.numpy as jnp
from jax import lax
from jax.experimental import pallas as pl
from jax.experimental.pallas import tpu as pltpu

_EPS = 1e-5


def _round_up(x, m):
    return (x + m - 1) // m * m


# --------------------------------------------------------------------------------------
# Pallas kernel
# --------------------------------------------------------------------------------------
def _basic_block_kernel(x_ref, wcat_ref, bcat_ref, w2_ref, b2_ref,
                        fc1w_ref, fc1b_ref, fc2w_ref, fc2b_ref, o_ref):
    nb, lout, kdim = x_ref.shape
    p = o_ref.shape[-1]                              # padded planes (multiple of 128)

    # One large-K MXU matmul covers conv1 AND the downsample conv (BN scales pre-folded).
    x = x_ref[...].reshape(nb * lout, kdim)          # (NB*Lout, size*Cin)
    acc = jnp.dot(x, wcat_ref[...], preferred_element_type=jnp.float32)
    acc = acc + bcat_ref[...]                        # folded BN biases for both branches

    y = jnp.maximum(acc[:, :p], 0.0)                 # relu(bn1(conv1(x)))
    residual = acc[:, p:]                            # bn_d(conv_d(x))
    # dropout(p=0.2) is identity in inference mode.
    # TODO(synk): training-mode dropout / batch-statistics BatchNorm not implemented.

    # conv2 (1x1) with bn2 folded in: z = y @ (diag(bn2_s) @ w2) + bn2_b @ w2
    z = jnp.dot(y.astype(w2_ref.dtype), w2_ref[...],
                preferred_element_type=jnp.float32) + b2_ref[...]

    z3 = z.reshape(nb, lout, p)
    res3 = residual.reshape(nb, lout, p)

    # Squeeze-Excite gate: global average pool -> fc1/relu -> fc2/sigmoid (per batch row).
    pooled = jnp.sum(z3, axis=1) * (1.0 / lout)      # (NB, P)
    h = jnp.dot(pooled, fc1w_ref[...], preferred_element_type=jnp.float32) + fc1b_ref[...]
    h = jnp.maximum(h, 0.0)
    logits = jnp.dot(h, fc2w_ref[...], preferred_element_type=jnp.float32) + fc2b_ref[...]
    s = pl.reciprocal(1.0 + jnp.exp(-logits), approx=True)   # sigmoid (divide on EUP)

    o_ref[...] = jnp.maximum(s[:, None, :] * z3 + res3, 0.0)


# --------------------------------------------------------------------------------------
# Wrapper
# --------------------------------------------------------------------------------------
def basic_block_1d(x, kp, *, stride, size, planes,
                   vmem_limit_bytes=48 * 1024 * 1024):
    """x: (N, Cin, 1, L) or (N, Cin, L) float32. Returns (N, planes, Lout) float32."""
    if x.ndim == 4:
        x = x[:, :, 0, :]                            # PyTorch forward does x.squeeze(2)
    N, cin, L = x.shape
    Lout = (L - size) // stride + 1
    K = size * cin
    P = kp["w2"].shape[-1]                           # padded planes
    HP = kp["fc1_w"].shape[-1]                       # padded SE hidden dim

    # Host-side glue: channels-last + strided im2col of the width taps (pure slicing).
    x_nlc = jnp.transpose(x, (0, 2, 1))              # (N, L, Cin)
    taps = [x_nlc[:, k:k + (Lout - 1) * stride + 1:stride, :] for k in range(size)]
    x_im = jnp.stack(taps, axis=2).reshape(N, Lout, K).astype(kp["w_cat"].dtype)

    # Batch blocking: amortize per-grid-step overhead, keep >=2 steps for v7x megacore.
    NB = max(1, min(N, 256 // max(Lout, 1)))
    if N >= 2:
        NB = min(NB, max(1, N // 2))

    def step_bytes(nb):                              # rough per-step VMEM footprint
        xb = nb * Lout * K * x_im.dtype.itemsize
        ob = nb * Lout * P * 4
        interm = 6 * nb * Lout * P * 4               # acc(2P) + y + z + residual + out
        return 2 * (xb + ob) + interm

    while NB > 1 and step_bytes(NB) > vmem_limit_bytes // 2:
        NB //= 2
    # TODO(synk): for very long sequences (step_bytes(1) ~ VMEM budget) switch to a two-pass
    # L-tiled schedule that accumulates the SE pool across tiles before applying the gate.

    N_pad = _round_up(N, NB)
    if N_pad != N:
        x_im = jnp.pad(x_im, ((0, N_pad - N), (0, 0), (0, 0)))

    out = pl.pallas_call(
        _basic_block_kernel,
        out_shape=jax.ShapeDtypeStruct((N_pad, Lout, P), jnp.float32),
        grid_spec=pltpu.PrefetchScalarGridSpec(
            num_scalar_prefetch=0,
            grid=(N_pad // NB,),
            in_specs=[
                pl.BlockSpec((NB, Lout, K), lambda n: (n, 0, 0)),
                pl.BlockSpec((K, 2 * P), lambda n: (0, 0)),
                pl.BlockSpec((1, 2 * P), lambda n: (0, 0)),
                pl.BlockSpec((P, P), lambda n: (0, 0)),
                pl.BlockSpec((1, P), lambda n: (0, 0)),
                pl.BlockSpec((P, HP), lambda n: (0, 0)),
                pl.BlockSpec((1, HP), lambda n: (0, 0)),
                pl.BlockSpec((HP, P), lambda n: (0, 0)),
                pl.BlockSpec((1, P), lambda n: (0, 0)),
            ],
            out_specs=pl.BlockSpec((NB, Lout, P), lambda n: (n, 0, 0)),
        ),
        compiler_params=pltpu.CompilerParams(
            dimension_semantics=("parallel",),
            vmem_limit_bytes=vmem_limit_bytes),
    )(x_im, kp["w_cat"], kp["b_cat"], kp["w2"], kp["b2"],
      kp["fc1_w"], kp["fc1_b"], kp["fc2_w"], kp["fc2_b"])

    out = out[:N, :, :planes]                        # drop batch / lane padding
    return jnp.transpose(out, (0, 2, 1))             # (N, planes, Lout) like PyTorch


# --------------------------------------------------------------------------------------
# Deterministic parameters (PyTorch layout) + folded/padded kernel layout
# --------------------------------------------------------------------------------------
def init_pt_params(key, inplanes, planes, size):
    hidden = round(planes / 16)
    ks = jax.random.split(key, 19)
    nrm = lambda k, shape, scale=0.1: scale * jax.random.normal(k, shape, jnp.float32)
    pt = {
        "w1": nrm(ks[0], (planes, inplanes, size)),
        "wd": nrm(ks[1], (planes, inplanes, size)),
        "w2": nrm(ks[2], (planes, planes, 1)),
        "fc1_w": nrm(ks[3], (hidden, planes)),
        "fc1_b": nrm(ks[4], (hidden,)),
        "fc2_w": nrm(ks[5], (planes, hidden)),
        "fc2_b": nrm(ks[6], (planes,)),
    }

    def bn_params(i):
        gamma = 1.0 + nrm(ks[7 + 4 * i], (planes,))
        beta = nrm(ks[8 + 4 * i], (planes,))
        mean = nrm(ks[9 + 4 * i], (planes,))
        var = jnp.abs(jax.random.normal(ks[10 + 4 * i], (planes,), jnp.float32)) + 0.5
        return gamma, beta, mean, var

    pt["bn1"], pt["bn2"], pt["bnd"] = bn_params(0), bn_params(1), bn_params(2)
    return pt


def pack_kernel_params(pt, inplanes, planes, size, *, compute_dtype=jnp.bfloat16):
    """Fold BatchNorms into the conv weights and lay everything out lane-dense."""
    hidden = round(planes / 16)
    P = _round_up(planes, 128)
    HP = _round_up(hidden, 128)
    K = size * inplanes

    def fold(gamma, beta, mean, var):
        s = gamma / jnp.sqrt(var + _EPS)
        return s, beta - mean * s

    s1, b1 = fold(*pt["bn1"])
    s2, b2 = fold(*pt["bn2"])
    sd, bd = fold(*pt["bnd"])

    def im2col_w(w, col_scale):                      # (planes, cin, size) -> (size*cin, planes)
        wm = jnp.transpose(w, (2, 1, 0)).reshape(K, planes)
        return wm * col_scale[None, :]

    w_cat = jnp.zeros((K, 2 * P), jnp.float32)
    w_cat = w_cat.at[:, :planes].set(im2col_w(pt["w1"], s1))
    w_cat = w_cat.at[:, P:P + planes].set(im2col_w(pt["wd"], sd))
    b_cat = jnp.zeros((1, 2 * P), jnp.float32)
    b_cat = b_cat.at[0, :planes].set(b1).at[0, P:P + planes].set(bd)

    w2m = pt["w2"][:, :, 0].T                        # (in, out)
    w2f = w2m * s2[:, None]                          # bn2 scale folded on input channels
    b2v = b2 @ w2m                                   # bn2 bias pushed through conv2
    w2p = jnp.zeros((P, P), jnp.float32).at[:planes, :planes].set(w2f)
    b2p = jnp.zeros((1, P), jnp.float32).at[0, :planes].set(b2v)

    fc1w = jnp.zeros((P, HP), jnp.float32).at[:planes, :hidden].set(pt["fc1_w"].T)
    fc1b = jnp.zeros((1, HP), jnp.float32).at[0, :hidden].set(pt["fc1_b"])
    fc2w = jnp.zeros((HP, P), jnp.float32).at[:hidden, :planes].set(pt["fc2_w"].T)
    fc2b = jnp.zeros((1, P), jnp.float32).at[0, :planes].set(pt["fc2_b"])

    return {
        "w_cat": w_cat.astype(compute_dtype), "b_cat": b_cat,
        "w2": w2p.astype(compute_dtype), "b2": b2p,
        "fc1_w": fc1w, "fc1_b": fc1b, "fc2_w": fc2w, "fc2_b": fc2b,
    }


# --------------------------------------------------------------------------------------
# Pure-JAX reference (mirrors the PyTorch module in eval mode)
# --------------------------------------------------------------------------------------
def ref_forward(x, pt, *, stride, size):
    if x.ndim == 4:
        x = x[:, :, 0, :]
    conv = lambda a, w, st: lax.conv_general_dilated(
        a, w, (st,), "VALID", dimension_numbers=("NCH", "OIH", "NCH"))

    def bn(a, params):
        g, b, m, v = (t[None, :, None] for t in params)
        return (a - m) / jnp.sqrt(v + _EPS) * g + b

    residual = bn(conv(x, pt["wd"], stride), pt["bnd"])
    out = jnp.maximum(bn(conv(x, pt["w1"], stride), pt["bn1"]), 0.0)
    out = bn(out, pt["bn2"])                         # dropout is identity in eval
    out = conv(out, pt["w2"], 1)
    original = out
    pooled = jnp.mean(out, axis=2)
    h = jnp.maximum(pooled @ pt["fc1_w"].T + pt["fc1_b"], 0.0)
    s = jax.nn.sigmoid(h @ pt["fc2_w"].T + pt["fc2_b"])
    return jnp.maximum(s[:, :, None] * original + residual, 0.0)


if __name__ == "__main__":
    N, inplanes, planes = 2, 8, 32
    L, size, stride = 32, 3, 2

    key = jax.random.PRNGKey(0)
    kx, kparam = jax.random.split(key)
    x = jax.random.normal(kx, (N, inplanes, 1, L), jnp.float32)

    pt = init_pt_params(kparam, inplanes, planes, size)
    y_ref = ref_forward(x, pt, stride=stride, size=size)

    run = jax.jit(functools.partial(basic_block_1d, stride=stride, size=size, planes=planes))

    # 1) f32 operands: validates the fused / BN-folded kernel structure tightly
    #    (tolerance accounts for the approximate EUP reciprocal in the SE gate).
    kp32 = pack_kernel_params(pt, inplanes, planes, size, compute_dtype=jnp.float32)
    y32 = jax.block_until_ready(run(x, kp32))
    assert y32.shape == y_ref.shape, (y32.shape, y_ref.shape)
    assert jnp.allclose(y32, y_ref, rtol=5e-3, atol=5e-3), float(jnp.max(jnp.abs(y32 - y_ref)))

    # 2) bf16 conv operands with f32 accumulation: fast path for v6e / v7x MXUs.
    kp16 = pack_kernel_params(pt, inplanes, planes, size, compute_dtype=jnp.bfloat16)
    y16 = jax.block_until_ready(run(x, kp16))
    assert y16.shape == y_ref.shape, (y16.shape, y_ref.shape)
    assert jnp.allclose(y16, y_ref, rtol=5e-2, atol=5e-2), float(jnp.max(jnp.abs(y16 - y_ref)))

    print("KERNEL_OK")
</pallas_src>

<mosaic_0001>
module attributes {stable_mosaic.version = 11 : i64} {
  func.func @_basic_block_kernel(%arg0: i32, %arg1: memref<1x15x24xf32, #tpu.memory_space<vmem>>, %arg2: memref<24x256xf32, #tpu.memory_space<vmem>>, %arg3: memref<1x256xf32, #tpu.memory_space<vmem>>, %arg4: memref<128x128xf32, #tpu.memory_space<vmem>>, %arg5: memref<1x128xf32, #tpu.memory_space<vmem>>, %arg6: memref<128x128xf32, #tpu.memory_space<vmem>>, %arg7: memref<1x128xf32, #tpu.memory_space<vmem>>, %arg8: memref<128x128xf32, #tpu.memory_space<vmem>>, %arg9: memref<1x128xf32, #tpu.memory_space<vmem>>, %arg10: memref<1x15x128xf32, #tpu.memory_space<vmem>>) attributes {dimension_semantics = [#tpu.dimension_semantics<parallel>], iteration_bounds = array<i64: 2>, scalar_prefetch = 0 : i64, scratch_operands = 0 : i64, tpu.core_type = #tpu.core_type<tc>, window_params = [{transform_indices = @transform_0, window_bounds = array<i64: 1, 15, 24>}, {pipeline_mode = #tpu.pipeline_mode<synchronous>, transform_indices = @transform_1, window_bounds = array<i64: 24, 256>}, {pipeline_mode = #tpu.pipeline_mode<synchronous>, transform_indices = @transform_2, window_bounds = array<i64: 1, 256>}, {pipeline_mode = #tpu.pipeline_mode<synchronous>, transform_indices = @transform_3, window_bounds = array<i64: 128, 128>}, {pipeline_mode = #tpu.pipeline_mode<synchronous>, transform_indices = @transform_4, window_bounds = array<i64: 1, 128>}, {pipeline_mode = #tpu.pipeline_mode<synchronous>, transform_indices = @transform_5, window_bounds = array<i64: 128, 128>}, {pipeline_mode = #tpu.pipeline_mode<synchronous>, transform_indices = @transform_6, window_bounds = array<i64: 1, 128>}, {pipeline_mode = #tpu.pipeline_mode<synchronous>, transform_indices = @transform_7, window_bounds = array<i64: 128, 128>}, {pipeline_mode = #tpu.pipeline_mode<synchronous>, transform_indices = @transform_8, window_bounds = array<i64: 1, 128>}, {transform_indices = @transform_9, window_bounds = array<i64: 1, 15, 128>}]} {
    %c0 = arith.constant 0 : index
    %c0_0 = arith.constant 0 : index
    %c0_1 = arith.constant 0 : index
    %0 = vector.load %arg1[%c0, %c0_0, %c0_1] : memref<1x15x24xf32, #tpu.memory_space<vmem>>, vector<1x15x24xf32>
    %1 = vector.shape_cast %0 : vector<1x15x24xf32> to vector<15x24xf32>
    %c0_2 = arith.constant 0 : index
    %c0_3 = arith.constant 0 : index
    %2 = vector.load %arg2[%c0_2, %c0_3] : memref<24x256xf32, #tpu.memory_space<vmem>>, vector<24x256xf32>
    %cst = arith.constant dense<0.000000e+00> : vector<15x256xf32>
    %3 = tpu.matmul %1, %2, %cst {dimension_numbers = #tpu.dot_dimension_numbers<[1], [0], [0], [1], [0, 0, 1, 1], [], []>} : vector<15x24xf32>, vector<24x256xf32>, vector<15x256xf32> -> vector<15x256xf32>
    %c0_4 = arith.constant 0 : index
    %c0_5 = arith.constant 0 : index
    %4 = vector.load %arg3[%c0_4, %c0_5] : memref<1x256xf32, #tpu.memory_space<vmem>>, vector<1x256xf32>
    %5 = vector.broadcast %4 : vector<1x256xf32> to vector<15x256xf32>
    %6 = arith.addf %3, %5 : vector<15x256xf32>
    %7 = vector.extract_strided_slice %6 {offsets = [0, 0], sizes = [15, 128], strides = [1, 1]} : vector<15x256xf32> to vector<15x128xf32>
    %cst_6 = arith.constant 0.000000e+00 : f32
    %8 = vector.broadcast %cst_6 : f32 to vector<15x128xf32>
    %9 = arith.maximumf %7, %8 : vector<15x128xf32>
    %10 = vector.extract_strided_slice %6 {offsets = [0, 128], sizes = [15, 128], strides = [1, 1]} : vector<15x256xf32> to vector<15x128xf32>
    %c0_7 = arith.constant 0 : index
    %c0_8 = arith.constant 0 : index
    %11 = vector.load %arg4[%c0_7, %c0_8] : memref<128x128xf32, #tpu.memory_space<vmem>>, vector<128x128xf32>
    %cst_9 = arith.constant dense<0.000000e+00> : vector<15x128xf32>
    %12 = tpu.matmul %9, %11, %cst_9 {dimension_numbers = #tpu.dot_dimension_numbers<[1], [0], [0], [1], [0, 0, 1, 1], [], []>} : vector<15x128xf32>, vector<128x128xf32>, vector<15x128xf32> -> vector<15x128xf32>
    %c0_10 = arith.constant 0 : index
    %c0_11 = arith.constant 0 : index
    %13 = vector.load %arg5[%c0_10, %c0_11] : memref<1x128xf32, #tpu.memory_space<vmem>>, vector<1x128xf32>
    %14 = vector.broadcast %13 : vector<1x128xf32> to vector<15x128xf32>
    %15 = arith.addf %12, %14 : vector<15x128xf32>
    %16 = vector.shape_cast %15 : vector<15x128xf32> to vector<1x15x128xf32>
    %17 = vector.shape_cast %10 : vector<15x128xf32> to vector<1x15x128xf32>
    %cst_12 = arith.constant dense<0.000000e+00> : vector<1x128xf32>
    %18 = vector.multi_reduction <add>, %16, %cst_12 [1] : vector<1x15x128xf32> to vector<1x128xf32>
    %cst_13 = arith.constant 0.0666666701 : f32
    %19 = vector.broadcast %cst_13 : f32 to vector<1x128xf32>
    %20 = arith.mulf %18, %19 : vector<1x128xf32>
    %c0_14 = arith.constant 0 : index
    %c0_15 = arith.constant 0 : index
    %21 = vector.load %arg6[%c0_14, %c0_15] : memref<128x128xf32, #tpu.memory_space<vmem>>, vector<128x128xf32>
    %cst_16 = arith.constant dense<0.000000e+00> : vector<1x128xf32>
    %22 = tpu.matmul %20, %21, %cst_16 {dimension_numbers = #tpu.dot_dimension_numbers<[1], [0], [0], [1], [0, 0, 1, 1], [], []>} : vector<1x128xf32>, vector<128x128xf32>, vector<1x128xf32> -> vector<1x128xf32>
    %c0_17 = arith.constant 0 : index
    %c0_18 = arith.constant 0 : index
    %23 = vector.load %arg7[%c0_17, %c0_18] : memref<1x128xf32, #tpu.memory_space<vmem>>, vector<1x128xf32>
    %24 = arith.addf %22, %23 : vector<1x128xf32>
    %cst_19 = arith.constant 0.000000e+00 : f32
    %25 = vector.broadcast %cst_19 : f32 to vector<1x128xf32>
    %26 = arith.maximumf %24, %25 : vector<1x128xf32>
    %c0_20 = arith.constant 0 : index
    %c0_21 = arith.constant 0 : index
    %27 = vector.load %arg8[%c0_20, %c0_21] : memref<128x128xf32, #tpu.memory_space<vmem>>, vector<128x128xf32>
    %cst_22 = arith.constant dense<0.000000e+00> : vector<1x128xf32>
    %28 = tpu.matmul %26, %27, %cst_22 {dimension_numbers = #tpu.dot_dimension_numbers<[1], [0], [0], [1], [0, 0, 1, 1], [], []>} : vector<1x128xf32>, vector<128x128xf32>, vector<1x128xf32> -> vector<1x128xf32>
    %c0_23 = arith.constant 0 : index
    %c0_24 = arith.constant 0 : index
    %29 = vector.load %arg9[%c0_23, %c0_24] : memref<1x128xf32, #tpu.memory_space<vmem>>, vector<1x128xf32>
    %30 = arith.addf %28, %29 : vector<1x128xf32>
    %cst_25 = arith.constant 0.000000e+00 : f32
    %31 = vector.broadcast %cst_25 : f32 to vector<1x128xf32>
    %32 = arith.subf %31, %30 : vector<1x128xf32>
    %33 = math.exp %32 : vector<1x128xf32>
    %cst_26 = arith.constant 1.000000e+00 : f32
    %34 = vector.broadcast %cst_26 : f32 to vector<1x128xf32>
    %35 = arith.addf %34, %33 : vector<1x128xf32>
    %36 = tpu.reciprocal %35 {approx = true} : vector<1x128xf32> -> vector<1x128xf32>
    %37 = vector.shape_cast %36 : vector<1x128xf32> to vector<1x1x128xf32>
    %38 = vector.broadcast %37 : vector<1x1x128xf32> to vector<1x15x128xf32>
    %39 = arith.mulf %38, %16 : vector<1x15x128xf32>
    %40 = arith.addf %39, %17 : vector<1x15x128xf32>
    %cst_27 = arith.constant 0.000000e+00 : f32
    %41 = vector.broadcast %cst_27 : f32 to vector<1x15x128xf32>
    %42 = arith.maximumf %40, %41 : vector<1x15x128xf32>
    %c0_28 = arith.constant 0 : index
    %c0_29 = arith.constant 0 : index
    %c0_30 = arith.constant 0 : index
    %43 = vector.load %arg10[%c0_28, %c0_29, %c0_30] : memref<1x15x128xf32, #tpu.memory_space<vmem>>, vector<1x15x128xf32>
    tpu.vector_store %arg10[%c0_28, %c0_29, %c0_30], %42 {strides = array<i32>} : memref<1x15x128xf32, #tpu.memory_space<vmem>>, vector<1x15x128xf32>,
    return
  }
  func.func @transform_0(%arg0: i32) -> (i32, i32, i32) {
    %c0_i32 = arith.constant 0 : i32
    %c0_i32_0 = arith.constant 0 : i32
    %c0_i32_1 = arith.constant 0 : i32
    return %arg0, %c0_i32, %c0_i32_0 : i32, i32, i32
  }
  func.func @transform_1(%arg0: i32) -> (i32, i32) {
    %c0_i32 = arith.constant 0 : i32
    %c0_i32_0 = arith.constant 0 : i32
    %c0_i32_1 = arith.constant 0 : i32
    return %c0_i32, %c0_i32_0 : i32, i32
  }
  func.func @transform_2(%arg0: i32) -> (i32, i32) {
    %c0_i32 = arith.constant 0 : i32
    %c0_i32_0 = arith.constant 0 : i32
    %c0_i32_1 = arith.constant 0 : i32
    return %c0_i32, %c0_i32_0 : i32, i32
  }
  func.func @transform_3(%arg0: i32) -> (i32, i32) {
    %c0_i32 = arith.constant 0 : i32
    %c0_i32_0 = arith.constant 0 : i32
    %c0_i32_1 = arith.constant 0 : i32
    return %c0_i32, %c0_i32_0 : i32, i32
  }
  func.func @transform_4(%arg0: i32) -> (i32, i32) {
    %c0_i32 = arith.constant 0 : i32
    %c0_i32_0 = arith.constant 0 : i32
    %c0_i32_1 = arith.constant 0 : i32
    return %c0_i32, %c0_i32_0 : i32, i32
  }
  func.func @transform_5(%arg0: i32) -> (i32, i32) {
    %c0_i32 = arith.constant 0 : i32
    %c0_i32_0 = arith.constant 0 : i32
    %c0_i32_1 = arith.constant 0 : i32
    return %c0_i32, %c0_i32_0 : i32, i32
  }
  func.func @transform_6(%arg0: i32) -> (i32, i32) {
    %c0_i32 = arith.constant 0 : i32
    %c0_i32_0 = arith.constant 0 : i32
    %c0_i32_1 = arith.constant 0 : i32
    return %c0_i32, %c0_i32_0 : i32, i32
  }
  func.func @transform_7(%arg0: i32) -> (i32, i32) {
    %c0_i32 = arith.constant 0 : i32
    %c0_i32_0 = arith.constant 0 : i32
    %c0_i32_1 = arith.constant 0 : i32
    return %c0_i32, %c0_i32_0 : i32, i32
  }
  func.func @transform_8(%arg0: i32) -> (i32, i32) {
    %c0_i32 = arith.constant 0 : i32
    %c0_i32_0 = arith.constant 0 : i32
    %c0_i32_1 = arith.constant 0 : i32
    return %c0_i32, %c0_i32_0 : i32, i32
  }
  func.func @transform_9(%arg0: i32) -> (i32, i32, i32) {
    %c0_i32 = arith.constant 0 : i32
    %c0_i32_0 = arith.constant 0 : i32
    %c0_i32_1 = arith.constant 0 : i32
    return %arg0, %c0_i32, %c0_i32_0 : i32, i32, i32
  }
}

</mosaic_0001>

<llo_original>
// kernel: basic_block_1d.1
$region0: #{basic_block_1d.1}
  #allocation0 [shape = 'u32[]', space=smem, size = 0x4, offset = 0x4, fixed_abs, tag = 'smem constant byte address 0x4 - core index']
  #allocation1 [shape = 'u32[144,128]{1,0:T(1,128)}', space=vmem, size = 0x12000, scoped, tag = 'internal scratch']
  %s0 = inlined_call_operand.vmem [shape: f32[2,15,24], index: 0, kind: input, shape index: {}]
  %s1 = inlined_call_operand.hbm [shape: f32[24,256], index: 1, kind: input, shape index: {}]
  %s2 = inlined_call_operand.vmem [shape: f32[1,256], index: 2, kind: input, shape index: {}]
  %s3 = inlined_call_operand.vmem [shape: f32[128,128], index: 3, kind: input, shape index: {}]
  %s4 = inlined_call_operand.vmem [shape: f32[1,128], index: 4, kind: input, shape index: {}]
  %s5 = inlined_call_operand.vmem [shape: f32[128,128], index: 5, kind: input, shape index: {}]
  %s6 = inlined_call_operand.vmem [shape: f32[1,128], index: 6, kind: input, shape index: {}]
  %s7 = inlined_call_operand.hbm [shape: f32[128,128], index: 7, kind: input, shape index: {}]
  %s8 = inlined_call_operand.vmem [shape: f32[1,128], index: 8, kind: input, shape index: {}]
  %s9 = inlined_call_operand.vmem [shape: f32[2,15,128], index: 9, kind: output, shape index: {}]
  %s10 = sld [smem:[#allocation0]]
  $region77: #{basic_block_1d.1} parent=0
    _
  %s12 = ssub.s32 1, %s10
  %s13 = scalar_select 0, %s12, %s10
  $region1: #{basic_block_1d.1} parent=0
    #allocation2 [shape = 'u8[24576]{0}', space=vmem, size = 0x6000, scoped, tag = 'input window, operand 1, single buffered']
    #allocation3 [shape = 's32[2]{0}', space=sflag, size = 0x8, scoped, tag = 'scoped memory for basic_block_1d.1']
    #allocation4 [shape = 'u8[65536]{0}', space=vmem, size = 0x10000, scoped, tag = 'input window, operand 7, single buffered']
    #allocation5 [shape = 's32[1]{0}', space=sflag, size = 0x4, scoped, tag = 'scoped memory for basic_block_1d.1']
    %14 = vsyncpa [#allocation3], 0
    %15 = vsyncpa [#allocation5], 0
    loop: start=0, step=1, limit=4
    $region2: #{basic_block_1d.1} parent=1 // loop_pre_header
      _
    $region3: #{basic_block_1d.1} parent=1 // loop_header
      %s17 = sphi 0, %s21
      %p18 = scmp.ge.s32.totalorder %s17, 4
      %s27 = sphi 0, %s29
      %s30 = sphi 0, %s27
      %s31 = sphi 0, %s30
      %s47 = sphi 0, %s31
      %s51 = sphi 0, %s51
      %s53 = sphi 0, %s51
      %s54 = sphi 0, %s53
      %s68 = sphi 0, %s54
      %s72 = sphi 0, %s72
      %s74 = sphi 0, %s72
      %s75 = sphi 0, %s74
      %s89 = sphi 0, %s75
      %s93 = sphi 0, %s93
      %s95 = sphi 0, %s93
      %s96 = sphi 0, %s95
      %s110 = sphi 0, %s96
      %s114 = sphi 0, %s114
      %s116 = sphi 0, %s114
      %s117 = sphi 0, %s116
      %s131 = sphi 0, %s117
      %s135 = sphi 0, %s135
      %s137 = sphi 0, %s135
      %s138 = sphi 0, %s137
      %s152 = sphi 0, %s138
      %s156 = sphi 0, %s156
      %s158 = sphi 0, %s156
      %s159 = sphi 0, %s158
      %s173 = sphi 0, %s159
      %s177 = sphi 0, %s177
      %s179 = sphi 0, %s177
      %s180 = sphi 0, %s179
      %s194 = sphi 0, %s180
      %s198 = sphi 0, %s198
      %s200 = sphi 0, %s198
      %s201 = sphi 0, %s200
      %s215 = sphi 0, %s201
      %s221 = sphi 0, %s223
      %s224 = sphi 0, %s221
      %s225 = sphi 0, %s224
      %s241 = sphi 0, %s225
    $region4: #{basic_block_1d.1} parent=1 // loop_header_branch
      %20 = sbr.rel (%p18) target = $region8
    $region5: #{basic_block_1d.1} parent=1 // loop_body
      %s22 = ssub.s32 %s17, 1
      %s23 = ssub.s32 %s17, 2
      %s24 = sadd.s32 %s17, 1
      %s25 = ssub.s32 %s17, %s24
      %p26 = scmp.eq.s32.totalorder %s25, 0
      %s28 = sadd.s32 %s27, 1
      %s29 = scalar_select %p26, %s27, %s28
      %p32 = pneg %p26
      %p33 = scmp.eq.s32.totalorder %s17, 1
      %p34 = por %p32, %p33
      %p35 = scmp.ne.s32.totalorder %s27, %s30
      %p36 = scmp.eq.s32.totalorder %s17, 0
      %p37 = por %p35, %p36
      %p38 = scmp.ne.s32.totalorder %s27, %s30
      %p39 = scmp.eq.s32.totalorder %s22, 1
      %p40 = por %p38, %p39
      %p41 = scmp.ne.s32.totalorder %s30, %s31
      %p42 = scmp.eq.s32.totalorder %s22, 0
      %p43 = por %p41, %p42
      %p44 = scmp.ne.s32.totalorder %s30, %s31
      %p45 = scmp.eq.s32.totalorder %s23, 1
      %p46 = por %p44, %p45
      %p48 = scmp.ne.s32.totalorder %s31, %s47
      %p49 = scmp.eq.s32.totalorder %s23, 0
      %p50 = por %p48, %p49
      %s52 = sadd.s32 %s51, 1
      %p55 = scmp.eq.s32.totalorder %s17, 1
      %p56 = scmp.ne.s32.totalorder %s51, %s53
      %p57 = scmp.eq.s32.totalorder %s17, 0
      %p58 = por %p56, %p57
      %p59 = scmp.ne.s32.totalorder %s51, %s53
      %p60 = scmp.eq.s32.totalorder %s22, 1
      %p61 = por %p59, %p60
      %p62 = scmp.ne.s32.totalorder %s53, %s54
      %p63 = scmp.eq.s32.totalorder %s22, 0
      %p64 = por %p62, %p63
      %p65 = scmp.ne.s32.totalorder %s53, %s54
      %p66 = scmp.eq.s32.totalorder %s23, 1
      %p67 = por %p65, %p66
      %p69 = scmp.ne.s32.totalorder %s54, %s68
      %p70 = scmp.eq.s32.totalorder %s23, 0
      %p71 = por %p69, %p70
      %s73 = sadd.s32 %s72, 1
      %p76 = scmp.eq.s32.totalorder %s17, 1
      %p77 = scmp.ne.s32.totalorder %s72, %s74
      %p78 = scmp.eq.s32.totalorder %s17, 0
      %p79 = por %p77, %p78
      %p80 = scmp.ne.s32.totalorder %s72, %s74
      %p81 = scmp.eq.s32.totalorder %s22, 1
      %p82 = por %p80, %p81
      %p83 = scmp.ne.s32.totalorder %s74, %s75
      %p84 = scmp.eq.s32.totalorder %s22, 0
      %p85 = por %p83, %p84
      %p86 = scmp.ne.s32.totalorder %s74, %s75
      %p87 = scmp.eq.s32.totalorder %s23, 1
      %p88 = por %p86, %p87
      %p90 = scmp.ne.s32.totalorder %s75, %s89
      %p91 = scmp.eq.s32.totalorder %s23, 0
      %p92 = por %p90, %p91
      %s94 = sadd.s32 %s93, 1
      %p97 = scmp.eq.s32.totalorder %s17, 1
      %p98 = scmp.ne.s32.totalorder %s93, %s95
      %p99 = scmp.eq.s32.totalorder %s17, 0
      %p100 = por %p98, %p99
      %p101 = scmp.ne.s32.totalorder %s93, %s95
      %p102 = scmp.eq.s32.totalorder %s22, 1
      %p103 = por %p101, %p102
      %p104 = scmp.ne.s32.totalorder %s95, %s96
      %p105 = scmp.eq.s32.totalorder %s22, 0
      %p106 = por %p104, %p105
      %p107 = scmp.ne.s32.totalorder %s95, %s96
      %p108 = scmp.eq.s32.totalorder %s23, 1
      %p109 = por %p107, %p108
      %p111 = scmp.ne.s32.totalorder %s96, %s110
      %p112 = scmp.eq.s32.totalorder %s23, 0
      %p113 = por %p111, %p112
      %s115 = sadd.s32 %s114, 1
      %p118 = scmp.eq.s32.totalorder %s17, 1
      %p119 = scmp.ne.s32.totalorder %s114, %s116
      %p120 = scmp.eq.s32.totalorder %s17, 0
      %p121 = por %p119, %p120
      %p122 = scmp.ne.s32.totalorder %s114, %s116
      %p123 = scmp.eq.s32.totalorder %s22, 1
      %p124 = por %p122, %p123
      %p125 = scmp.ne.s32.totalorder %s116, %s117
      %p126 = scmp.eq.s32.totalorder %s22, 0
      %p127 = por %p125, %p126
      %p128 = scmp.ne.s32.totalorder %s116, %s117
      %p129 = scmp.eq.s32.totalorder %s23, 1
      %p130 = por %p128, %p129
      %p132 = scmp.ne.s32.totalorder %s117, %s131
      %p133 = scmp.eq.s32.totalorder %s23, 0
      %p134 = por %p132, %p133
      %s136 = sadd.s32 %s135, 1
      %p139 = scmp.eq.s32.totalorder %s17, 1
      %p140 = scmp.ne.s32.totalorder %s135, %s137
      %p141 = scmp.eq.s32.totalorder %s17, 0
      %p142 = por %p140, %p141
      %p143 = scmp.ne.s32.totalorder %s135, %s137
      %p144 = scmp.eq.s32.totalorder %s22, 1
      %p145 = por %p143, %p144
      %p146 = scmp.ne.s32.totalorder %s137, %s138
      %p147 = scmp.eq.s32.totalorder %s22, 0
      %p148 = por %p146, %p147
      %p149 = scmp.ne.s32.totalorder %s137, %s138
      %p150 = scmp.eq.s32.totalorder %s23, 1
      %p151 = por %p149, %p150
      %p153 = scmp.ne.s32.totalorder %s138, %s152
      %p154 = scmp.eq.s32.totalorder %s23, 0
      %p155 = por %p153, %p154
      %s157 = sadd.s32 %s156, 1
      %p160 = scmp.eq.s32.totalorder %s17, 1
      %p161 = scmp.ne.s32.totalorder %s156, %s158
      %p162 = scmp.eq.s32.totalorder %s17, 0
      %p163 = por %p161, %p162
      %p164 = scmp.ne.s32.totalorder %s156, %s158
      %p165 = scmp.eq.s32.totalorder %s22, 1
      %p166 = por %p164, %p165
      %p167 = scmp.ne.s32.totalorder %s158, %s159
      %p168 = scmp.eq.s32.totalorder %s22, 0
      %p169 = por %p167, %p168
      %p170 = scmp.ne.s32.totalorder %s158, %s159
      %p171 = scmp.eq.s32.totalorder %s23, 1
      %p172 = por %p170, %p171
      %p174 = scmp.ne.s32.totalorder %s159, %s173
      %p175 = scmp.eq.s32.totalorder %s23, 0
      %p176 = por %p174, %p175
      %s178 = sadd.s32 %s177, 1
      %p181 = scmp.eq.s32.totalorder %s17, 1
      %p182 = scmp.ne.s32.totalorder %s177, %s179
      %p183 = scmp.eq.s32.totalorder %s17, 0
      %p184 = por %p182, %p183
      %p185 = scmp.ne.s32.totalorder %s177, %s179
      %p186 = scmp.eq.s32.totalorder %s22, 1
      %p187 = por %p185, %p186
      %p188 = scmp.ne.s32.totalorder %s179, %s180
      %p189 = scmp.eq.s32.totalorder %s22, 0
      %p190 = por %p188, %p189
      %p191 = scmp.ne.s32.totalorder %s179, %s180
      %p192 = scmp.eq.s32.totalorder %s23, 1
      %p193 = por %p191, %p192
      %p195 = scmp.ne.s32.totalorder %s180, %s194
      %p196 = scmp.eq.s32.totalorder %s23, 0
      %p197 = por %p195, %p196
      %s199 = sadd.s32 %s198, 1
      %p202 = scmp.eq.s32.totalorder %s17, 1
      %p203 = scmp.ne.s32.totalorder %s198, %s200
      %p204 = scmp.eq.s32.totalorder %s17, 0
      %p205 = por %p203, %p204
      %p206 = scmp.ne.s32.totalorder %s198, %s200
      %p207 = scmp.eq.s32.totalorder %s22, 1
      %p208 = por %p206, %p207
      %p209 = scmp.ne.s32.totalorder %s200, %s201
      %p210 = scmp.eq.s32.totalorder %s22, 0
      %p211 = por %p209, %p210
      %p212 = scmp.ne.s32.totalorder %s200, %s201
      %p213 = scmp.eq.s32.totalorder %s23, 1
      %p214 = por %p212, %p213
      %p216 = scmp.ne.s32.totalorder %s201, %s215
      %p217 = scmp.eq.s32.totalorder %s23, 0
      %p218 = por %p216, %p217
      %s219 = ssub.s32 %s17, %s24
      %p220 = scmp.eq.s32.totalorder %s219, 0
      %s222 = sadd.s32 %s221, 1
      %s223 = scalar_select %p220, %s221, %s222
      %p226 = pneg %p220
      %p227 = scmp.eq.s32.totalorder %s17, 1
      %p228 = por %p226, %p227
      %p229 = scmp.ne.s32.totalorder %s221, %s224
      %p230 = scmp.eq.s32.totalorder %s17, 0
      %p231 = por %p229, %p230
      %p232 = scmp.ne.s32.totalorder %s221, %s224
      %p233 = scmp.eq.s32.totalorder %s22, 1
      %p234 = por %p232, %p233
      %p235 = scmp.ne.s32.totalorder %s224, %s225
      %p236 = scmp.eq.s32.totalorder %s22, 0
      %p237 = por %p235, %p236
      %p238 = scmp.ne.s32.totalorder %s224, %s225
      %p239 = scmp.eq.s32.totalorder %s23, 1
      %p240 = por %p238, %p239
      %p242 = scmp.ne.s32.totalorder %s225, %s241
      %p243 = scmp.eq.s32.totalorder %s23, 0
      %p244 = por %p242, %p243
      %p245 = scmp.le.s32.totalorder 1, %s17
      %p246 = scmp.lt.s32.totalorder %s17, 3
      %p247 = pnand %p245, %p246
      %p248 = pneg %p247
      // Predicated region
      $region9: #{basic_block_1d.1} parent=5 // pred_check
        _
      $region10: #{basic_block_1d.1} parent=5 // pred_check_branch
        %250 = sbr.rel (%p247) target = $region12
      $region11: #{basic_block_1d.1} parent=5 // pred_region
        %s251 = ssub.s32 %s17, 1
        // Predicated region
        $region13: #{basic_block_1d.1} parent=11 // pred_check
          %p252 = pneg %p64
        $region14: #{basic_block_1d.1} parent=11 // pred_check_branch
          %254 = sbr.rel (%p252) target = $region16
        $region15: #{basic_block_1d.1} parent=11 // pred_region
          %s256 = ssub.s32 768, 768
          %257 = vsyncadd [#allocation3], %s256
          %s258 = sshll.u32 [#allocation2], 4
          %s259 = int_to_ptr.vmem [resolvable:$true] %s258
          %264 = dma.hbm_to_vmem [thread:$0]  %s1, 768, %s259, [#allocation3], 256, 256, 16
        $region16: #{basic_block_1d.1} parent=11 // pred_fallthru
          _
        // Predicated region
        $region17: #{basic_block_1d.1} parent=11 // pred_check
          %p265 = pneg %p85
        $region18: #{basic_block_1d.1} parent=11 // pred_check_branch
          %267 = sbr.rel (%p265) target = $region20
        $region19: #{basic_block_1d.1} parent=11 // pred_region
          _
        $region20: #{basic_block_1d.1} parent=11 // pred_fallthru
          _
        // Predicated region
        $region21: #{basic_block_1d.1} parent=11 // pred_check
          %p268 = pneg %p106
        $region22: #{basic_block_1d.1} parent=11 // pred_check_branch
          %270 = sbr.rel (%p268) target = $region24
        $region23: #{basic_block_1d.1} parent=11 // pred_region
          _
        $region24: #{basic_block_1d.1} parent=11 // pred_fallthru
          _
        // Predicated region
        $region25: #{basic_block_1d.1} parent=11 // pred_check
          %p271 = pneg %p127
        $region26: #{basic_block_1d.1} parent=11 // pred_check_branch
          %273 = sbr.rel (%p271) target = $region28
        $region27: #{basic_block_1d.1} parent=11 // pred_region
          _
        $region28: #{basic_block_1d.1} parent=11 // pred_fallthru
          _
        // Predicated region
        $region29: #{basic_block_1d.1} parent=11 // pred_check
          %p274 = pneg %p148
        $region30: #{basic_block_1d.1} parent=11 // pred_check_branch
          %276 = sbr.rel (%p274) target = $region32
        $region31: #{basic_block_1d.1} parent=11 // pred_region
          _
        $region32: #{basic_block_1d.1} parent=11 // pred_fallthru
          _
        // Predicated region
        $region33: #{basic_block_1d.1} parent=11 // pred_check
          %p277 = pneg %p169
        $region34: #{basic_block_1d.1} parent=11 // pred_check_branch
          %279 = sbr.rel (%p277) target = $region36
        $region35: #{basic_block_1d.1} parent=11 // pred_region
          _
        $region36: #{basic_block_1d.1} parent=11 // pred_fallthru
          _
        // Predicated region
        $region37: #{basic_block_1d.1} parent=11 // pred_check
          %p280 = pneg %p190
        $region38: #{basic_block_1d.1} parent=11 // pred_check_branch
          %282 = sbr.rel (%p280) target = $region40
        $region39: #{basic_block_1d.1} parent=11 // pred_region
          %s284 = ssub.s32 2048, 2048
          %285 = vsyncadd [#allocation5], %s284
          %s286 = sshll.u32 [#allocation4], 4
          %s287 = int_to_ptr.vmem [resolvable:$true] %s286
          %292 = dma.hbm_to_vmem [thread:$0]  %s7, 2048, %s287, [#allocation5], 128, 128, 8
        $region40: #{basic_block_1d.1} parent=11 // pred_fallthru
          _
        // Predicated region
        $region41: #{basic_block_1d.1} parent=11 // pred_check
          %p293 = pneg %p211
        $region42: #{basic_block_1d.1} parent=11 // pred_check_branch
          %295 = sbr.rel (%p293) target = $region44
        $region43: #{basic_block_1d.1} parent=11 // pred_region
          _
        $region44: #{basic_block_1d.1} parent=11 // pred_fallthru
          _
      $region12: #{basic_block_1d.1} parent=5 // pred_fallthru
        _
      %p296 = scmp.lt.s32.totalorder %s17, 2
      // Predicated region
      $region45: #{basic_block_1d.1} parent=5 // pred_check
        %p297 = pneg %p296
      $region46: #{basic_block_1d.1} parent=5 // pred_check_branch
        %299 = sbr.rel (%p297) target = $region48
      $region47: #{basic_block_1d.1} parent=5 // pred_region
        // Predicated region
        $region49: #{basic_block_1d.1} parent=47 // pred_check
          %p300 = pneg %p37
        $region50: #{basic_block_1d.1} parent=47 // pred_check_branch
          %302 = sbr.rel (%p300) target = $region52
        $region51: #{basic_block_1d.1} parent=47 // pred_region
          %p303 = scmp.lt.s32.totalorder %s17, 1
          %s304 = scalar_select %p303, %s17, 1
          %s305 = smul.addr %s304, 2
          %s306 = smul.addr %s305, 8
          %s307 = scalar_lea.vmem %s0, %s306
        $region52: #{basic_block_1d.1} parent=47 // pred_fallthru
          _
      $region48: #{basic_block_1d.1} parent=5 // pred_fallthru
        _
      %p308 = scmp.le.s32.totalorder 1, %s17
      %p309 = scmp.lt.s32.totalorder %s17, 3
      %p310 = pnand %p308, %p309
      %p311 = pneg %p310
      // Predicated region
      $region53: #{basic_block_1d.1} parent=5 // pred_check
        _
      $region54: #{basic_block_1d.1} parent=5 // pred_check_branch
        %313 = sbr.rel (%p310) target = $region56
      $region55: #{basic_block_1d.1} parent=5 // pred_region
        %s314 = ssub.s32 %s17, 1
        // Predicated region
        $region57: #{basic_block_1d.1} parent=55 // pred_check
          %p315 = pneg %p64
        $region58: #{basic_block_1d.1} parent=55 // pred_check_branch
          %317 = sbr.rel (%p315) target = $region60
        $region59: #{basic_block_1d.1} parent=55 // pred_region
          %318 = dma.done [#allocation3], 768
        $region60: #{basic_block_1d.1} parent=55 // pred_fallthru
          _
        // Predicated region
        $region61: #{basic_block_1d.1} parent=55 // pred_check
          %p319 = pneg %p190
        $region62: #{basic_block_1d.1} parent=55 // pred_check_branch
          %321 = sbr.rel (%p319) target = $region64
        $region63: #{basic_block_1d.1} parent=55 // pred_region
          %322 = dma.done [#allocation5], 2048
        $region64: #{basic_block_1d.1} parent=55 // pred_fallthru
          _
        %p323 = scmp.lt.s32.totalorder %s22, 1
        %s324 = scalar_select %p323, %s22, 1
        %s325 = smul.addr %s324, 2
        %s326 = smul.addr %s325, 8
        %s327 = scalar_lea.vmem %s0, %s326
        %p328 = pneg %p43
        %p329 = pneg %p40
        %p330 = pneg %p64
        %p331 = pneg %p61
        %p332 = pneg %p85
        %p333 = pneg %p82
        %p334 = pneg %p106
        %p335 = pneg %p103
        %p336 = pneg %p127
        %p337 = pneg %p124
        %p338 = pneg %p148
        %p339 = pneg %p145
        %p340 = pneg %p169
        %p341 = pneg %p166
        %p342 = pneg %p190
        %p343 = pneg %p187
        %p344 = pneg %p211
        %p345 = pneg %p208
        %p346 = pneg %p237
        %p347 = pneg %p234
        %p348 = scmp.lt.s32.totalorder %s22, 1
        %s349 = scalar_select %p348, %s22, 1
        %s350 = smul.addr %s349, 2
        %s351 = smul.addr %s350, 8
        %s352 = scalar_lea.vmem %s9, %s351
        %p353 = scmp.lt.s32.totalorder %s22, 1
        %s354 = scalar_select %p353, %s22, 1
        %s355 = smul.addr %s354, 2
        %s356 = smul.addr %s355, 8
        %s357 = scalar_lea.vmem %s0, %s356
        %p358 = scmp.lt.s32.totalorder %s22, 1
        %s359 = scalar_select %p358, %s22, 1
        %s360 = smul.addr %s359, 2
        %s361 = smul.addr %s360, 8
        %s362 = scalar_lea.vmem %s9, %s361
        %v363 = vld [vmem:[%s357] sm:$0xff]
        %v364 = vld [vmem:[%s357 + $0x8] sm:$0x7f]
        %v365 = vld [vmem:[#allocation2] sm:$0xff]
        %v366 = vld [vmem:[#allocation2 + $0x8] sm:$0xff]
        %v367 = vld [vmem:[#allocation2 + $0x10] sm:$0xff]
        %v368 = vld [vmem:[#allocation2 + $0x18] sm:$0xff]
        %v369 = vld [vmem:[#allocation2 + $0x20] sm:$0xff]
        %v370 = vld [vmem:[#allocation2 + $0x28] sm:$0xff]
        %v371 = vld [vmem:[%s2] sm:$0x3]
        %v373 = vlaneseq
        %v374 = vshrl.u32 %v373, 7
        %v375 = vsub.s32 0, %v374
        %v376 = vrot.slane %v371, %v375
        %v377 = vlaneseq
        %v378 = vshrl.u32 %v377, 7
        %v379 = vsub.s32 1, %v378
        %v380 = vrot.slane %v371, %v379
        %vm383 = vcmask 195584
        %v385 = vsel %vm383, %v363, 0
        %v388 = vsel %vm383, %v364, 0
        %390 = vmatprep.subr.mxu0 %v366
        %391 = vmatpush1.msra.mxu0 %v365
        %392 = vmatprep.subr.mxu0 %v368
        %393 = vmatpush1.msra.mxu0 %v367
        %394 = vmatprep.subr.mxu0 %v370
        %395 = vmatpush1.msra.mxu0 %v369
        %396 = vmatprep.subr.mxu0 0.0
        %397 = vmatpush1.msra.mxu0 0.0
        %398 = vmatprep.subr.mxu0 0.0
        %399 = vmatpush1.msra.mxu0 0.0
        %400 = vmatprep.subr.mxu0 0.0
        %401 = vmatpush1.msra.mxu0 0.0
        %402 = vmatprep.subr.mxu0 0.0
        %403 = vmatpush1.msra.mxu0 0.0
        %404 = vmatprep.subr.mxu0 0.0
        %405 = vmatpush1.msra.mxu0 0.0
        %406 = vmatprep.subr.mxu0 0.0
        %407 = vmatpush1.msra.mxu0 0.0
        %408 = vmatprep.subr.mxu0 0.0
        %409 = vmatpush1.msra.mxu0 0.0
        %410 = vmatprep.subr.mxu0 0.0
        %411 = vmatpush1.msra.mxu0 0.0
        %412 = vmatprep.subr.mxu0 0.0
        %413 = vmatpush1.msra.mxu0 0.0
        %414 = vmatprep.subr.mxu0 0.0
        %415 = vmatpush1.msra.mxu0 0.0
        %416 = vmatprep.subr.mxu0 0.0
        %417 = vmatpush1.msra.mxu0 0.0
        %418 = vmatprep.subr.mxu0 0.0
        %419 = vmatpush1.msra.mxu0 0.0
        %420 = vmatprep.subr.mxu0 0.0
        %421 = vmatpush1.msra.mxu0 0.0
        %422 = vmatprep.subr.mxu0 0.0
        %423 = vmatpush1.msra.mxu0 0.0
        %424 = vmatprep.subr.mxu0 0.0
        %425 = vmatpush1.msra.mxu0 0.0
        %426 = vmatprep.subr.mxu0 0.0
        %427 = vmatpush1.msra.mxu0 0.0
        %428 = vmatprep.subr.mxu0 0.0
        %429 = vmatpush1.msra.mxu0 0.0
        %430 = vmatprep.subr.mxu0 0.0
        %431 = vmatpush1.msra.mxu0 0.0
        %432 = vmatprep.subr.mxu0 0.0
        %433 = vmatpush1.msra.mxu0 0.0
        %434 = vmatprep.subr.mxu0 0.0
        %435 = vmatpush1.msra.mxu0 0.0
        %436 = vmatprep.subr.mxu0 0.0
        %437 = vmatpush1.msra.mxu0 0.0
        %438 = vmatprep.subr.mxu0 0.0
        %439 = vmatpush1.msra.mxu0 0.0
        %440 = vmatprep.subr.mxu0 0.0
        %441 = vmatpush1.msra.mxu0 0.0
        %442 = vmatprep.subr.mxu0 0.0
        %443 = vmatpush1.msra.mxu0 0.0
        %444 = vmatprep.subr.mxu0 0.0
        %445 = vmatpush1.msra.mxu0 0.0
        %446 = vmatprep.subr.mxu0 0.0
        %447 = vmatpush1.msra.mxu0 0.0
        %448 = vmatprep.subr.mxu0 0.0
        %449 = vmatpush1.msra.mxu0 0.0
        %450 = vmatprep.subr.mxu0 0.0
        %451 = vmatpush1.msra.mxu0 0.0
        %452 = vmatprep.subr.mxu0 0.0
        %453 = vmatpush1.msra.mxu0 0.0
        %454 = vmatprep.mubr.f32.mxu0 0.0
        %455 = vmatmul.mubr.f32.gmra.mrb[0].mxu0 %v385
        %v456 = vpop.f32.mrb[0].mxu0
        %v457 = vadd.f32 %v376, %v456
        %v458 = vpop.f32.mrb[0].mxu0
        %v459 = vadd.f32 %v380, %v458
        %460 = vmatprep.mubr.f32.mxu0 0.0
        %461 = vmatmul.mubr.f32.gmra.mrb[0].mxu0 %v388
        %v462 = vpop.f32.mrb[0].mxu0
        %v463 = vadd.f32 %v376, %v462
        %v464 = vpop.f32.mrb[0].mxu0
        %v465 = vadd.f32 %v380, %v464
        %466 = vdwg.mxu0
        %v467 = vmax.f32 %v457, 0.0
        %v468 = vmax.f32 %v463, 0.0
        %v469 = vld [vmem:[%s3] sm:$0xff]
        %v470 = vld [vmem:[%s3 + $0x8] sm:$0xff]
        %v471 = vld [vmem:[%s3 + $0x10] sm:$0xff]
        %v472 = vld [vmem:[%s3 + $0x18] sm:$0xff]
        %v473 = vld [vmem:[%s3 + $0x20] sm:$0xff]
        %v474 = vld [vmem:[%s3 + $0x28] sm:$0xff]
        %v475 = vld [vmem:[%s3 + $0x30] sm:$0xff]
        %v476 = vld [vmem:[%s3 + $0x38] sm:$0xff]
        %v477 = vld [vmem:[%s3 + $0x40] sm:$0xff]
        %v478 = vld [vmem:[%s3 + $0x48] sm:$0xff]
        %v479 = vld [vmem:[%s3 + $0x50] sm:$0xff]
        %v480 = vld [vmem:[%s3 + $0x58] sm:$0xff]
        %v481 = vld [vmem:[%s3 + $0x60] sm:$0xff]
        %v482 = vld [vmem:[%s3 + $0x68] sm:$0xff]
        %v483 = vld [vmem:[%s3 + $0x70] sm:$0xff]
        %v484 = vld [vmem:[%s3 + $0x78] sm:$0xff]
        %v485 = vld [vmem:[%s4] sm:$0x1]
        %v487 = vlaneseq
        %v488 = vshrl.u32 %v487, 7
        %v489 = vsub.s32 0, %v488
        %v490 = vrot.slane %v485, %v489
        %492 = vmatprep.subr.mxu0 0.0
        %493 = vmatpush1.msra.mxu0 %v469
        %494 = vmatprep.subr.mxu0 0.0
        %495 = vmatpush1.msra.mxu0 %v470
        %496 = vmatprep.subr.mxu0 0.0
        %497 = vmatpush1.msra.mxu0 %v471
        %498 = vmatprep.subr.mxu0 0.0
        %499 = vmatpush1.msra.mxu0 %v472
        %500 = vmatprep.subr.mxu0 0.0
        %501 = vmatpush1.msra.mxu0 %v473
        %502 = vmatprep.subr.mxu0 0.0
        %503 = vmatpush1.msra.mxu0 %v474
        %504 = vmatprep.subr.mxu0 0.0
        %505 = vmatpush1.msra.mxu0 %v475
        %506 = vmatprep.subr.mxu0 0.0
        %507 = vmatpush1.msra.mxu0 %v476
        %508 = vmatprep.subr.mxu0 0.0
        %509 = vmatpush1.msra.mxu0 %v477
        %510 = vmatprep.subr.mxu0 0.0
        %511 = vmatpush1.msra.mxu0 %v478
        %512 = vmatprep.subr.mxu0 0.0
        %513 = vmatpush1.msra.mxu0 %v479
        %514 = vmatprep.subr.mxu0 0.0
        %515 = vmatpush1.msra.mxu0 %v480
        %516 = vmatprep.subr.mxu0 0.0
        %517 = vmatpush1.msra.mxu0 %v481
        %518 = vmatprep.subr.mxu0 0.0
        %519 = vmatpush1.msra.mxu0 %v482
        %520 = vmatprep.subr.mxu0 0.0
        %521 = vmatpush1.msra.mxu0 %v483
        %522 = vmatprep.subr.mxu0 0.0
        %523 = vmatpush1.msra.mxu0 %v484
        %524 = vmatprep.subr.mxu0 0.0
        %525 = vmatpush1.msra.mxu0 0.0
        %526 = vmatprep.subr.mxu0 0.0
        %527 = vmatpush1.msra.mxu0 0.0
        %528 = vmatprep.subr.mxu0 0.0
        %529 = vmatpush1.msra.mxu0 0.0
        %530 = vmatprep.subr.mxu0 0.0
        %531 = vmatpush1.msra.mxu0 0.0
        %532 = vmatprep.subr.mxu0 0.0
        %533 = vmatpush1.msra.mxu0 0.0
        %534 = vmatprep.subr.mxu0 0.0
        %535 = vmatpush1.msra.mxu0 0.0
        %536 = vmatprep.subr.mxu0 0.0
        %537 = vmatpush1.msra.mxu0 0.0
        %538 = vmatprep.subr.mxu0 0.0
        %539 = vmatpush1.msra.mxu0 0.0
        %540 = vmatprep.subr.mxu0 0.0
        %541 = vmatpush1.msra.mxu0 0.0
        %542 = vmatprep.subr.mxu0 0.0
        %543 = vmatpush1.msra.mxu0 0.0
        %544 = vmatprep.subr.mxu0 0.0
        %545 = vmatpush1.msra.mxu0 0.0
        %546 = vmatprep.subr.mxu0 0.0
        %547 = vmatpush1.msra.mxu0 0.0
        %548 = vmatprep.subr.mxu0 0.0
        %549 = vmatpush1.msra.mxu0 0.0
        %550 = vmatprep.subr.mxu0 0.0
        %551 = vmatpush1.msra.mxu0 0.0
        %552 = vmatprep.subr.mxu0 0.0
        %553 = vmatpush1.msra.mxu0 0.0
        %554 = vmatprep.subr.mxu0 0.0
        %555 = vmatpush1.msra.mxu0 0.0
        %556 = vmatprep.mubr.f32.mxu0 0.0
        %557 = vmatmul.mubr.f32.gmra.mrb[0].mxu0 %v467
        %v558 = vpop.f32.mrb[0].mxu0
        %v559 = vadd.f32 %v490, %v558
        %v560 = vpop.f32.mrb[0].mxu0
        %561 = vmatprep.mubr.f32.mxu0 0.0
        %562 = vmatmul.mubr.f32.gmra.mrb[0].mxu0 %v468
        %v563 = vpop.f32.mrb[0].mxu0
        %v564 = vadd.f32 %v490, %v563
        %v565 = vpop.f32.mrb[0].mxu0
        %566 = vdwg.mxu0
        %vm567 = vcmask 1046528
        %v568 = vsel %vm567, %v564, 0.0
        %v569 = vadd.f32 %v559, %v568
        %v570 = vrot.slane %v569, 4
        %v571 = vadd.f32 %v569, %v570
        %v572 = vrot.slane %v571, 2
        %v573 = vadd.f32 %v571, %v572
        %v574 = vrot.slane %v573, 1
        %v575 = vadd.f32 %v573, %v574
        %v576 = vmul.f32 %v575, 0.06666667
        %v577 = vld [vmem:[%s5] sm:$0xff]
        %v578 = vld [vmem:[%s5 + $0x8] sm:$0xff]
        %v579 = vld [vmem:[%s5 + $0x10] sm:$0xff]
        %v580 = vld [vmem:[%s5 + $0x18] sm:$0xff]
        %v581 = vld [vmem:[%s5 + $0x20] sm:$0xff]
        %v582 = vld [vmem:[%s5 + $0x28] sm:$0xff]
        %v583 = vld [vmem:[%s5 + $0x30] sm:$0xff]
        %v584 = vld [vmem:[%s5 + $0x38] sm:$0xff]
        %v585 = vld [vmem:[%s5 + $0x40] sm:$0xff]
        %v586 = vld [vmem:[%s5 + $0x48] sm:$0xff]
        %v587 = vld [vmem:[%s5 + $0x50] sm:$0xff]
        %v588 = vld [vmem:[%s5 + $0x58] sm:$0xff]
        %v589 = vld [vmem:[%s5 + $0x60] sm:$0xff]
        %v590 = vld [vmem:[%s5 + $0x68] sm:$0xff]
        %v591 = vld [vmem:[%s5 + $0x70] sm:$0xff]
        %v592 = vld [vmem:[%s5 + $0x78] sm:$0xff]
        %v593 = vld [vmem:[%s6] sm:$0x1]
        %594 = vmatprep.subr.mxu0 0.0
        %595 = vmatpush1.msra.mxu0 %v577
        %596 = vmatprep.subr.mxu0 0.0
        %597 = vmatpush1.msra.mxu0 %v578
        %598 = vmatprep.subr.mxu0 0.0
        %599 = vmatpush1.msra.mxu0 %v579
        %600 = vmatprep.subr.mxu0 0.0
        %601 = vmatpush1.msra.mxu0 %v580
        %602 = vmatprep.subr.mxu0 0.0
        %603 = vmatpush1.msra.mxu0 %v581
        %604 = vmatprep.subr.mxu0 0.0
        %605 = vmatpush1.msra.mxu0 %v582
        %606 = vmatprep.subr.mxu0 0.0
        %607 = vmatpush1.msra.mxu0 %v583
        %608 = vmatprep.subr.mxu0 0.0
        %609 = vmatpush1.msra.mxu0 %v584
        %610 = vmatprep.subr.mxu0 0.0
        %611 = vmatpush1.msra.mxu0 %v585
        %612 = vmatprep.subr.mxu0 0.0
        %613 = vmatpush1.msra.mxu0 %v586
        %614 = vmatprep.subr.mxu0 0.0
        %615 = vmatpush1.msra.mxu0 %v587
        %616 = vmatprep.subr.mxu0 0.0
        %617 = vmatpush1.msra.mxu0 %v588
        %618 = vmatprep.subr.mxu0 0.0
        %619 = vmatpush1.msra.mxu0 %v589
        %620 = vmatprep.subr.mxu0 0.0
        %621 = vmatpush1.msra.mxu0 %v590
        %622 = vmatprep.subr.mxu0 0.0
        %623 = vmatpush1.msra.mxu0 %v591
        %624 = vmatprep.subr.mxu0 0.0
        %625 = vmatpush1.msra.mxu0 %v592
        %626 = vmatprep.subr.mxu0 0.0
        %627 = vmatpush1.msra.mxu0 0.0
        %628 = vmatprep.subr.mxu0 0.0
        %629 = vmatpush1.msra.mxu0 0.0
        %630 = vmatprep.subr.mxu0 0.0
        %631 = vmatpush1.msra.mxu0 0.0
        %632 = vmatprep.subr.mxu0 0.0
        %633 = vmatpush1.msra.mxu0 0.0
        %634 = vmatprep.subr.mxu0 0.0
        %635 = vmatpush1.msra.mxu0 0.0
        %636 = vmatprep.subr.mxu0 0.0
        %637 = vmatpush1.msra.mxu0 0.0
        %638 = vmatprep.subr.mxu0 0.0
        %639 = vmatpush1.msra.mxu0 0.0
        %640 = vmatprep.subr.mxu0 0.0
        %641 = vmatpush1.msra.mxu0 0.0
        %642 = vmatprep.subr.mxu0 0.0
        %643 = vmatpush1.msra.mxu0 0.0
        %644 = vmatprep.subr.mxu0 0.0
        %645 = vmatpush1.msra.mxu0 0.0
        %646 = vmatprep.subr.mxu0 0.0
        %647 = vmatpush1.msra.mxu0 0.0
        %648 = vmatprep.subr.mxu0 0.0
        %649 = vmatpush1.msra.mxu0 0.0
        %650 = vmatprep.subr.mxu0 0.0
        %651 = vmatpush1.msra.mxu0 0.0
        %652 = vmatprep.subr.mxu0 0.0
        %653 = vmatpush1.msra.mxu0 0.0
        %654 = vmatprep.subr.mxu0 0.0
        %655 = vmatpush1.msra.mxu0 0.0
        %656 = vmatprep.subr.mxu0 0.0
        %657 = vmatpush1.msra.mxu0 0.0
        %658 = vmatprep.mubr.f32.mxu0 0.0
        %659 = vmatmul.mubr.f32.gmra.mrb[0].mxu0 %v576
        %v660 = vpop.f32.mrb[0].mxu0
        %v661 = vadd.f32 %v593, %v660
        %v662 = vpop.f32.mrb[0].mxu0
        %663 = vdwg.mxu0
        %v664 = vmax.f32 %v661, 0.0
        %v665 = vld [vmem:[#allocation4] sm:$0xff]
        %v666 = vld [vmem:[#allocation4 + $0x8] sm:$0xff]
        %v667 = vld [vmem:[#allocation4 + $0x10] sm:$0xff]
        %v668 = vld [vmem:[#allocation4 + $0x18] sm:$0xff]
        %v669 = vld [vmem:[#allocation4 + $0x20] sm:$0xff]
        %v670 = vld [vmem:[#allocation4 + $0x28] sm:$0xff]
        %v671 = vld [vmem:[#allocation4 + $0x30] sm:$0xff]
        %v672 = vld [vmem:[#allocation4 + $0x38] sm:$0xff]
        %v673 = vld [vmem:[#allocation4 + $0x40] sm:$0xff]
        %v674 = vld [vmem:[#allocation4 + $0x48] sm:$0xff]
        %v675 = vld [vmem:[#allocation4 + $0x50] sm:$0xff]
        %v676 = vld [vmem:[#allocation4 + $0x58] sm:$0xff]
        %v677 = vld [vmem:[#allocation4 + $0x60] sm:$0xff]
        %v678 = vld [vmem:[#allocation4 + $0x68] sm:$0xff]
        %v679 = vld [vmem:[#allocation4 + $0x70] sm:$0xff]
        %v680 = vld [vmem:[#allocation4 + $0x78] sm:$0xff]
        %v681 = vld [vmem:[%s8] sm:$0x1]
        %682 = vmatprep.subr.mxu0 0.0
        %683 = vmatpush1.msra.mxu0 %v665
        %684 = vmatprep.subr.mxu0 0.0
        %685 = vmatpush1.msra.mxu0 %v666
        %686 = vmatprep.subr.mxu0 0.0
        %687 = vmatpush1.msra.mxu0 %v667
        %688 = vmatprep.subr.mxu0 0.0
        %689 = vmatpush1.msra.mxu0 %v668
        %690 = vmatprep.subr.mxu0 0.0
        %691 = vmatpush1.msra.mxu0 %v669
        %692 = vmatprep.subr.mxu0 0.0
        %693 = vmatpush1.msra.mxu0 %v670
        %694 = vmatprep.subr.mxu0 0.0
        %695 = vmatpush1.msra.mxu0 %v671
        %696 = vmatprep.subr.mxu0 0.0
        %697 = vmatpush1.msra.mxu0 %v672
        %698 = vmatprep.subr.mxu0 0.0
        %699 = vmatpush1.msra.mxu0 %v673
        %700 = vmatprep.subr.mxu0 0.0
        %701 = vmatpush1.msra.mxu0 %v674
        %702 = vmatprep.subr.mxu0 0.0
        %703 = vmatpush1.msra.mxu0 %v675
        %704 = vmatprep.subr.mxu0 0.0
        %705 = vmatpush1.msra.mxu0 %v676
        %706 = vmatprep.subr.mxu0 0.0
        %707 = vmatpush1.msra.mxu0 %v677
        %708 = vmatprep.subr.mxu0 0.0
        %709 = vmatpush1.msra.mxu0 %v678
        %710 = vmatprep.subr.mxu0 0.0
        %711 = vmatpush1.msra.mxu0 %v679
        %712 = vmatprep.subr.mxu0 0.0
        %713 = vmatpush1.msra.mxu0 %v680
        %714 = vmatprep.subr.mxu0 0.0
        %715 = vmatpush1.msra.mxu0 0.0
        %716 = vmatprep.subr.mxu0 0.0
        %717 = vmatpush1.msra.mxu0 0.0
        %718 = vmatprep.subr.mxu0 0.0
        %719 = vmatpush1.msra.mxu0 0.0
        %720 = vmatprep.subr.mxu0 0.0
        %721 = vmatpush1.msra.mxu0 0.0
        %722 = vmatprep.subr.mxu0 0.0
        %723 = vmatpush1.msra.mxu0 0.0
        %724 = vmatprep.subr.mxu0 0.0
        %725 = vmatpush1.msra.mxu0 0.0
        %726 = vmatprep.subr.mxu0 0.0
        %727 = vmatpush1.msra.mxu0 0.0
        %728 = vmatprep.subr.mxu0 0.0
        %729 = vmatpush1.msra.mxu0 0.0
        %730 = vmatprep.subr.mxu0 0.0
        %731 = vmatpush1.msra.mxu0 0.0
        %732 = vmatprep.subr.mxu0 0.0
        %733 = vmatpush1.msra.mxu0 0.0
        %734 = vmatprep.subr.mxu0 0.0
        %735 = vmatpush1.msra.mxu0 0.0
        %736 = vmatprep.subr.mxu0 0.0
        %737 = vmatpush1.msra.mxu0 0.0
        %738 = vmatprep.subr.mxu0 0.0
        %739 = vmatpush1.msra.mxu0 0.0
        %740 = vmatprep.subr.mxu0 0.0
        %741 = vmatpush1.msra.mxu0 0.0
        %742 = vmatprep.subr.mxu0 0.0
        %743 = vmatpush1.msra.mxu0 0.0
        %744 = vmatprep.subr.mxu0 0.0
        %745 = vmatpush1.msra.mxu0 0.0
        %746 = vmatprep.mubr.f32.mxu0 0.0
        %747 = vmatmul.mubr.f32.gmra.mrb[0].mxu0 %v664
        %v748 = vpop.f32.mrb[0].mxu0
        %v749 = vadd.f32 %v681, %v748
        %v750 = vpop.f32.mrb[0].mxu0
        %751 = vdwg.mxu0
        %v752 = vsub.f32 0.0, %v749
        %v753 = vmul.f32 %v752, 1.442695
        %v754 = vpow.pop %v753
        %v755 = vadd.f32 %v754, 1.0
        %v756 = vrcp.pop %v755
        %v757 = vlaneseq
        %v758 = vshrl.u32 %v757, 7
        %v759 = vsub.s32 0, %v758
        %v760 = vrot.slane %v756, %v759
        %v761 = vmul.f32 %v760, %v559
        %v762 = vmul.f32 %v760, %v564
        %v763 = vadd.f32 %v761, %v459
        %v764 = vadd.f32 %v762, %v465
        %v765 = vmax.f32 %v763, 0.0
        %v766 = vmax.f32 %v764, 0.0
        %767 = vst [vmem:[%s362] sm:$0xff] %v765
        %768 = vst [vmem:[%s362 + $0x8] sm:$0x7f] %v766
        %p769 = scmp.lt.s32.totalorder %s22, 1
        %s770 = scalar_select %p769, %s22, 1
        %s771 = smul.addr %s770, 2
        %s772 = smul.addr %s771, 8
        %s773 = scalar_lea.vmem %s9, %s772
        // Predicated region
        $region65: #{basic_block_1d.1} parent=55 // pred_check
          %p774 = pneg %p234
        $region66: #{basic_block_1d.1} parent=55 // pred_check_branch
          %776 = sbr.rel (%p774) target = $region68
        $region67: #{basic_block_1d.1} parent=55 // pred_region
          _
        $region68: #{basic_block_1d.1} parent=55 // pred_fallthru
          _
      $region56: #{basic_block_1d.1} parent=5 // pred_fallthru
        _
      %p777 = scmp.le.s32.totalorder 2, %s17
      // Predicated region
      $region69: #{basic_block_1d.1} parent=5 // pred_check
        %p778 = pneg %p777
      $region70: #{basic_block_1d.1} parent=5 // pred_check_branch
        %780 = sbr.rel (%p778) target = $region72
      $region71: #{basic_block_1d.1} parent=5 // pred_region
        %s781 = ssub.s32 %s17, 2
        // Predicated region
        $region73: #{basic_block_1d.1} parent=71 // pred_check
          %p782 = pneg %p240
        $region74: #{basic_block_1d.1} parent=71 // pred_check_branch
          %784 = sbr.rel (%p782) target = $region76
        $region75: #{basic_block_1d.1} parent=71 // pred_region
          %p785 = scmp.lt.s32.totalorder %s23, 1
          %s786 = scalar_select %p785, %s23, 1
          %s787 = smul.addr %s786, 2
          %s788 = smul.addr %s787, 8
          %s789 = scalar_lea.vmem %s9, %s788
        $region76: #{basic_block_1d.1} parent=71 // pred_fallthru
          _
      $region72: #{basic_block_1d.1} parent=5 // pred_fallthru
        _
    $region6: #{basic_block_1d.1} parent=1 // loop_footer
      %s21 = sadd.s32 1, %s17
    $region7: #{basic_block_1d.1} parent=1 // loop_footer_branch
      %16 = sbr.rel target = $region3
    $region8: #{basic_block_1d.1} parent=1 // loop_exit
      _
    %790 = vsyncpa [#allocation3], 1
    %s791 = scalar_lea.sflag [#allocation3], 1
    %792 = vsyncpa %s791, 1
    %793 = vsyncpa [#allocation5], 1

</llo_original>
